<compile_context>
chip_gen: v7x
topology: tpu7x:2x2x1
jax: 0.10.0
libtpu: 0.0.40
codegen_flags: <defaults>
</compile_context>

<pallas_src>
import functools

import numpy as np

import jax
import jax.numpy as jnp
from jax.experimental import pallas as pl
from jax.experimental.pallas import tpu as pltpu


def _round_up(x, m):
    return ((x + m - 1) // m) * m


def _forward_kernel(x_ref, w1_ref, b1_ref, w2_ref, b2_ref, wh_ref, bh_ref,
                    y_ref, *, min_pred, max_pred):
    """One (TM, D) row tile through the whole network.

    x_ref  : (TM, D)       input rows (compute dtype, e.g. bf16)
    w1_ref : (D, Hp)       layer-1 weight, hidden padded to 128 lanes
    b1_ref : (1, Hp)       layer-1 bias (f32)
    w2_ref : (Hp, Hp)      layer-2 weight
    b2_ref : (1, Hp)       layer-2 bias (f32)
    wh_ref : (Hp, N_out)   [h_pred | h_disc_0 .. h_disc_{S-1}] fused heads
    bh_ref : (1, N_out)    fused head biases (f32)
    y_ref  : (TM, N_out)   clamped head outputs (f32)

    Matmuls run in the operand dtype with f32 accumulation; bias adds, ReLU
    and clamp stay f32 (v5e VPU has no bf16).
    """
    cdt = w1_ref.dtype
    z = jnp.dot(x_ref[...], w1_ref[...], preferred_element_type=jnp.float32)
    z = jnp.maximum(z + b1_ref[...], 0.0)                       # ReLU, f32
    z = jnp.dot(z.astype(cdt), w2_ref[...], preferred_element_type=jnp.float32)
    z = jnp.maximum(z + b2_ref[...], 0.0)                       # ReLU, f32
    y = jnp.dot(z.astype(cdt), wh_ref[...], preferred_element_type=jnp.float32)
    y = y + bh_ref[...]
    if min_pred is not None:
        y = jnp.maximum(y, min_pred)
    if max_pred is not None:
        y = jnp.minimum(y, max_pred)
    y_ref[...] = y.astype(y_ref.dtype)


def prepare_params(weights, *, compute_dtype=jnp.bfloat16, hidden_pad=128):
    """Pad / fuse the module weights once (hoisted out of the hot path).

    Returns a dict of small arrays:
      w1 (D, Hp), b1 (1, Hp), w2 (Hp, Hp), b2 (1, Hp),
      wh (Hp, O*(S+1)) = [h_pred | h_disc_0..S-1], bh (1, O*(S+1)).
    Zero-padded hidden columns produce exactly 0 through bias-add + ReLU, so
    they are inert; padding makes every matmul K/N lane-dense (128-wide).
    """
    D, H = weights["w1"].shape
    Hp = _round_up(max(H, hidden_pad), 128)
    f32 = jnp.float32
    w1 = jnp.pad(weights["w1"], ((0, 0), (0, Hp - H))).astype(compute_dtype)
    b1 = jnp.pad(weights["b1"], ((0, 0), (0, Hp - H))).astype(f32)
    w2 = jnp.pad(weights["w2"], ((0, Hp - H), (0, Hp - H))).astype(compute_dtype)
    b2 = jnp.pad(weights["b2"], ((0, 0), (0, Hp - H))).astype(f32)
    wh = jnp.concatenate([weights["wp"], weights["wd"]], axis=1)      # (H, O+S*O)
    bh = jnp.concatenate([weights["bp"], weights["bd"]], axis=1)      # (1, O+S*O)
    wh = jnp.pad(wh, ((0, Hp - H), (0, 0))).astype(compute_dtype)     # (Hp, O+S*O)
    return {"w1": w1, "b1": b1, "w2": w2, "b2": b2,
            "wh": wh, "bh": bh.astype(f32)}


def disc_msdanet_forward(prepared, X_s, X_t, *, min_pred=0.0, max_pred=np.inf,
                         row_tile=512, lane_dense_below=4096):
    """Reproduces Disc_MSDANet.forward.

    Inputs:
      prepared: output of prepare_params (padded/fused weights)
      X_s: list of (m_i, D) source arrays (n_sources of them)
      X_t: (n, D) target array
    Outputs (matching the PyTorch module):
      y_spred: list of (m_i, O)   clamp(h_pred(phi(X_s[i])))
      y_sdisc: list of (m_i, O)   clamp(h_disc[i](phi(X_s[i])))
      y_tpred: (n, O)             clamp(h_pred(phi(X_t)))
      y_tdisc: list of (n, O)     clamp(h_disc[i](phi(X_t)))
    """
    n_sources = len(X_s)
    D, Hp = prepared["w1"].shape
    n_head_cols = prepared["wh"].shape[1]
    O = n_head_cols // (n_sources + 1)
    cdt = prepared["w1"].dtype

    # --- flatten all inputs into one row block (sources first, target last) ---
    xs = list(X_s) + [X_t]
    row_sizes = [int(x.shape[0]) for x in xs]
    offsets = np.cumsum([0] + row_sizes)
    M = int(offsets[-1])

    TM = _round_up(min(int(row_tile), _round_up(M, 8)), 8)   # sublane-aligned tile
    M_pad = _round_up(M, TM)
    grid = (M_pad // TM,)

    x = jnp.concatenate(xs, axis=0).astype(cdt)              # (M, D), no ones column
    if M_pad != M:
        x = jnp.pad(x, ((0, M_pad - M), (0, 0)))             # padded rows discarded later

    # Output width: 128-lane-dense slab only when M is small (latency bound);
    # narrow (n_head_cols) when M is large so HBM writeback carries payload,
    # not 32x of zero padding.
    if M < lane_dense_below:
        N_out = _round_up(max(n_head_cols, 128), 128)
    else:
        N_out = n_head_cols
    wh, bh = prepared["wh"], prepared["bh"]
    if N_out != n_head_cols:
        wh = jnp.pad(wh, ((0, 0), (0, N_out - n_head_cols)))
        bh = jnp.pad(bh, ((0, 0), (0, N_out - n_head_cols)))

    min_p = None if (min_pred is None or min_pred == -np.inf) else float(min_pred)
    max_p = None if (max_pred is None or max_pred == np.inf) else float(max_pred)
    kernel = functools.partial(_forward_kernel, min_pred=min_p, max_pred=max_p)

    nbytes = lambda a: int(a.size) * a.dtype.itemsize
    cost = pl.CostEstimate(
        flops=2 * M_pad * (D * Hp + Hp * Hp + Hp * N_out),
        transcendentals=0,
        bytes_accessed=(M_pad * D * x.dtype.itemsize + M_pad * N_out * 4
                        + nbytes(prepared["w1"]) + nbytes(prepared["b1"])
                        + nbytes(prepared["w2"]) + nbytes(prepared["b2"])
                        + nbytes(wh) + nbytes(bh)),
    )

    y_all = pl.pallas_call(
        kernel,
        out_shape=jax.ShapeDtypeStruct((M_pad, N_out), jnp.float32),
        grid=grid,
        in_specs=[
            pl.BlockSpec((TM, D), lambda i: (i, 0)),     # row tile: double-buffered
            pl.BlockSpec((D, Hp), lambda i: (0, 0)),     # weights: VMEM-resident
            pl.BlockSpec((1, Hp), lambda i: (0, 0)),
            pl.BlockSpec((Hp, Hp), lambda i: (0, 0)),
            pl.BlockSpec((1, Hp), lambda i: (0, 0)),
            pl.BlockSpec((Hp, N_out), lambda i: (0, 0)),
            pl.BlockSpec((1, N_out), lambda i: (0, 0)),
        ],
        out_specs=pl.BlockSpec((TM, N_out), lambda i: (i, 0)),
        compiler_params=pltpu.CompilerParams(
            dimension_semantics=("parallel",)),          # megacore-shardable on v7x
        cost_estimate=cost,
    )(x, prepared["w1"], prepared["b1"], prepared["w2"], prepared["b2"], wh, bh)

    # --- slice the slab back into the module's output structure (layout only) ---
    def rows(i):
        return y_all[int(offsets[i]):int(offsets[i + 1])]

    y_spred = [rows(i)[:, :O] for i in range(n_sources)]
    y_tpred = rows(n_sources)[:, :O]
    y_sdisc = [rows(i)[:, O * (1 + i): O * (2 + i)] for i in range(n_sources)]
    y_tdisc = [rows(n_sources)[:, O * (1 + i): O * (2 + i)] for i in range(n_sources)]
    return y_spred, y_sdisc, y_tpred, y_tdisc


def _reference_forward(X_s, X_t, weights, min_pred=0.0, max_pred=np.inf):
    """Pure-JAX f32 reference of the same forward, for correctness checking."""
    def feat(x):
        z = jnp.maximum(x @ weights["w1"] + weights["b1"], 0.0)
        z = jnp.maximum(z @ weights["w2"] + weights["b2"], 0.0)
        return z
    clamp = lambda x: jnp.clip(x, min_pred, max_pred)
    O = weights["wp"].shape[1]
    sx = [feat(x) for x in X_s]
    tx = feat(X_t)
    y_spred = [clamp(z @ weights["wp"] + weights["bp"]) for z in sx]
    y_tpred = clamp(tx @ weights["wp"] + weights["bp"])
    y_sdisc = [clamp(sx[i] @ weights["wd"][:, i * O:(i + 1) * O]
                     + weights["bd"][:, i * O:(i + 1) * O]) for i in range(len(X_s))]
    y_tdisc = [clamp(tx @ weights["wd"][:, i * O:(i + 1) * O]
                     + weights["bd"][:, i * O:(i + 1) * O]) for i in range(len(X_s))]
    return y_spred, y_sdisc, y_tpred, y_tdisc


def make_weights(key, input_dim, hidden_dim, output_dim, n_sources):
    ks = jax.random.split(key, 8)
    scale = 0.1
    return {
        "w1": scale * jax.random.normal(ks[0], (input_dim, hidden_dim), jnp.float32),
        "b1": scale * jax.random.normal(ks[1], (1, hidden_dim), jnp.float32),
        "w2": scale * jax.random.normal(ks[2], (hidden_dim, hidden_dim), jnp.float32),
        "b2": scale * jax.random.normal(ks[3], (1, hidden_dim), jnp.float32),
        "wp": scale * jax.random.normal(ks[4], (hidden_dim, output_dim), jnp.float32),
        "bp": scale * jax.random.normal(ks[5], (1, output_dim), jnp.float32),
        "wd": scale * jax.random.normal(ks[6], (hidden_dim, n_sources * output_dim), jnp.float32),
        "bd": scale * jax.random.normal(ks[7], (1, n_sources * output_dim), jnp.float32),
    }


if __name__ == "__main__":
    # Small, deterministic example shapes consistent with the module.
    input_dim = 19      # params['input_dim']
    output_dim = 1      # params['output_dim']
    n_sources = 3
    hidden_dim = 32
    batch = 64          # per source / target; M = 4 * 64 = 256 rows total

    key = jax.random.PRNGKey(0)
    k_w, k_s, k_t = jax.random.split(key, 3)
    weights = make_weights(k_w, input_dim, hidden_dim, output_dim, n_sources)

    src_keys = jax.random.split(k_s, n_sources)
    X_s = [jax.random.normal(src_keys[i], (batch, input_dim), jnp.float32)
           for i in range(n_sources)]
    X_t = jax.random.normal(k_t, (batch, input_dim), jnp.float32)

    # row_tile=64 so the demo actually exercises a multi-step grid (4 tiles).
    fwd = jax.jit(functools.partial(disc_msdanet_forward, row_tile=64))

    # --- bf16-operand build (v6e/v7x fast path) ---
    prep_bf16 = prepare_params(weights, compute_dtype=jnp.bfloat16)
    y_spred, y_sdisc, y_tpred, y_tdisc = fwd(prep_bf16, X_s, X_t)
    jax.block_until_ready(y_tpred)
    jax.block_until_ready(y_spred[-1])
    jax.block_until_ready(y_sdisc[-1])
    jax.block_until_ready(y_tdisc[-1])

    r_spred, r_sdisc, r_tpred, r_tdisc = _reference_forward(X_s, X_t, weights)
    for a, b in zip(y_spred + y_sdisc + [y_tpred] + y_tdisc,
                    r_spred + r_sdisc + [r_tpred] + r_tdisc):
        assert a.shape == b.shape
        assert jnp.allclose(a, b, atol=2e-2, rtol=2e-2)   # bf16-operand tolerance

    # --- exact f32 build (v5e / verification path) ---
    prep_f32 = prepare_params(weights, compute_dtype=jnp.float32)
    z_spred, z_sdisc, z_tpred, z_tdisc = fwd(prep_f32, X_s, X_t)
    jax.block_until_ready(z_tpred)
    for a, b in zip(z_spred + z_sdisc + [z_tpred] + z_tdisc,
                    r_spred + r_sdisc + [r_tpred] + r_tdisc):
        assert a.shape == b.shape
        assert jnp.allclose(a, b, atol=1e-5, rtol=1e-5)

    print("KERNEL_OK")
</pallas_src>

<mosaic_0001>
module attributes {stable_mosaic.version = 11 : i64} {
  func.func @_forward_kernel(%arg0: i32, %arg1: memref<64x19xbf16, #tpu.memory_space<vmem>>, %arg2: memref<19x128xbf16, #tpu.memory_space<vmem>>, %arg3: memref<1x128xf32, #tpu.memory_space<vmem>>, %arg4: memref<128x128xbf16, #tpu.memory_space<vmem>>, %arg5: memref<1x128xf32, #tpu.memory_space<vmem>>, %arg6: memref<128x128xbf16, #tpu.memory_space<vmem>>, %arg7: memref<1x128xf32, #tpu.memory_space<vmem>>, %arg8: memref<64x128xf32, #tpu.memory_space<vmem>>) attributes {dimension_semantics = [#tpu.dimension_semantics<parallel>], iteration_bounds = array<i64: 4>, scalar_prefetch = 0 : i64, scratch_operands = 0 : i64, tpu.core_type = #tpu.core_type<tc>, window_params = [{transform_indices = @transform_0, window_bounds = array<i64: 64, 19>}, {pipeline_mode = #tpu.pipeline_mode<synchronous>, transform_indices = @transform_1, window_bounds = array<i64: 19, 128>}, {pipeline_mode = #tpu.pipeline_mode<synchronous>, transform_indices = @transform_2, window_bounds = array<i64: 1, 128>}, {pipeline_mode = #tpu.pipeline_mode<synchronous>, transform_indices = @transform_3, window_bounds = array<i64: 128, 128>}, {pipeline_mode = #tpu.pipeline_mode<synchronous>, transform_indices = @transform_4, window_bounds = array<i64: 1, 128>}, {pipeline_mode = #tpu.pipeline_mode<synchronous>, transform_indices = @transform_5, window_bounds = array<i64: 128, 128>}, {pipeline_mode = #tpu.pipeline_mode<synchronous>, transform_indices = @transform_6, window_bounds = array<i64: 1, 128>}, {transform_indices = @transform_7, window_bounds = array<i64: 64, 128>}]} {
    %c0 = arith.constant 0 : index
    %c0_0 = arith.constant 0 : index
    %0 = vector.load %arg1[%c0, %c0_0] : memref<64x19xbf16, #tpu.memory_space<vmem>>, vector<64x19xbf16>
    %c0_1 = arith.constant 0 : index
    %c0_2 = arith.constant 0 : index
    %1 = vector.load %arg2[%c0_1, %c0_2] : memref<19x128xbf16, #tpu.memory_space<vmem>>, vector<19x128xbf16>
    %cst = arith.constant dense<0.000000e+00> : vector<64x128xf32>
    %2 = tpu.matmul %0, %1, %cst {dimension_numbers = #tpu.dot_dimension_numbers<[1], [0], [0], [1], [0, 0, 1, 1], [], []>} : vector<64x19xbf16>, vector<19x128xbf16>, vector<64x128xf32> -> vector<64x128xf32>
    %c0_3 = arith.constant 0 : index
    %c0_4 = arith.constant 0 : index
    %3 = vector.load %arg3[%c0_3, %c0_4] : memref<1x128xf32, #tpu.memory_space<vmem>>, vector<1x128xf32>
    %4 = vector.broadcast %3 : vector<1x128xf32> to vector<64x128xf32>
    %5 = arith.addf %2, %4 : vector<64x128xf32>
    %cst_5 = arith.constant 0.000000e+00 : f32
    %6 = vector.broadcast %cst_5 : f32 to vector<64x128xf32>
    %7 = arith.maximumf %5, %6 : vector<64x128xf32>
    %8 = arith.truncf %7 : vector<64x128xf32> to vector<64x128xbf16>
    %c0_6 = arith.constant 0 : index
    %c0_7 = arith.constant 0 : index
    %9 = vector.load %arg4[%c0_6, %c0_7] : memref<128x128xbf16, #tpu.memory_space<vmem>>, vector<128x128xbf16>
    %cst_8 = arith.constant dense<0.000000e+00> : vector<64x128xf32>
    %10 = tpu.matmul %8, %9, %cst_8 {dimension_numbers = #tpu.dot_dimension_numbers<[1], [0], [0], [1], [0, 0, 1, 1], [], []>} : vector<64x128xbf16>, vector<128x128xbf16>, vector<64x128xf32> -> vector<64x128xf32>
    %c0_9 = arith.constant 0 : index
    %c0_10 = arith.constant 0 : index
    %11 = vector.load %arg5[%c0_9, %c0_10] : memref<1x128xf32, #tpu.memory_space<vmem>>, vector<1x128xf32>
    %12 = vector.broadcast %11 : vector<1x128xf32> to vector<64x128xf32>
    %13 = arith.addf %10, %12 : vector<64x128xf32>
    %cst_11 = arith.constant 0.000000e+00 : f32
    %14 = vector.broadcast %cst_11 : f32 to vector<64x128xf32>
    %15 = arith.maximumf %13, %14 : vector<64x128xf32>
    %16 = arith.truncf %15 : vector<64x128xf32> to vector<64x128xbf16>
    %c0_12 = arith.constant 0 : index
    %c0_13 = arith.constant 0 : index
    %17 = vector.load %arg6[%c0_12, %c0_13] : memref<128x128xbf16, #tpu.memory_space<vmem>>, vector<128x128xbf16>
    %cst_14 = arith.constant dense<0.000000e+00> : vector<64x128xf32>
    %18 = tpu.matmul %16, %17, %cst_14 {dimension_numbers = #tpu.dot_dimension_numbers<[1], [0], [0], [1], [0, 0, 1, 1], [], []>} : vector<64x128xbf16>, vector<128x128xbf16>, vector<64x128xf32> -> vector<64x128xf32>
    %c0_15 = arith.constant 0 : index
    %c0_16 = arith.constant 0 : index
    %19 = vector.load %arg7[%c0_15, %c0_16] : memref<1x128xf32, #tpu.memory_space<vmem>>, vector<1x128xf32>
    %20 = vector.broadcast %19 : vector<1x128xf32> to vector<64x128xf32>
    %21 = arith.addf %18, %20 : vector<64x128xf32>
    %cst_17 = arith.constant 0.000000e+00 : f32
    %22 = vector.broadcast %cst_17 : f32 to vector<64x128xf32>
    %23 = arith.maximumf %21, %22 : vector<64x128xf32>
    %c0_18 = arith.constant 0 : index
    %c0_19 = arith.constant 0 : index
    %24 = vector.load %arg8[%c0_18, %c0_19] : memref<64x128xf32, #tpu.memory_space<vmem>>, vector<64x128xf32>
    tpu.vector_store %arg8[%c0_18, %c0_19], %23 {strides = array<i32>} : memref<64x128xf32, #tpu.memory_space<vmem>>, vector<64x128xf32>,
    return
  }
  func.func @transform_0(%arg0: i32) -> (i32, i32) {
    %c0_i32 = arith.constant 0 : i32
    %c0_i32_0 = arith.constant 0 : i32
    return %arg0, %c0_i32 : i32, i32
  }
  func.func @transform_1(%arg0: i32) -> (i32, i32) {
    %c0_i32 = arith.constant 0 : i32
    %c0_i32_0 = arith.constant 0 : i32
    %c0_i32_1 = arith.constant 0 : i32
    return %c0_i32, %c0_i32_0 : i32, i32
  }
  func.func @transform_2(%arg0: i32) -> (i32, i32) {
    %c0_i32 = arith.constant 0 : i32
    %c0_i32_0 = arith.constant 0 : i32
    %c0_i32_1 = arith.constant 0 : i32
    return %c0_i32, %c0_i32_0 : i32, i32
  }
  func.func @transform_3(%arg0: i32) -> (i32, i32) {
    %c0_i32 = arith.constant 0 : i32
    %c0_i32_0 = arith.constant 0 : i32
    %c0_i32_1 = arith.constant 0 : i32
    return %c0_i32, %c0_i32_0 : i32, i32
  }
  func.func @transform_4(%arg0: i32) -> (i32, i32) {
    %c0_i32 = arith.constant 0 : i32
    %c0_i32_0 = arith.constant 0 : i32
    %c0_i32_1 = arith.constant 0 : i32
    return %c0_i32, %c0_i32_0 : i32, i32
  }
  func.func @transform_5(%arg0: i32) -> (i32, i32) {
    %c0_i32 = arith.constant 0 : i32
    %c0_i32_0 = arith.constant 0 : i32
    %c0_i32_1 = arith.constant 0 : i32
    return %c0_i32, %c0_i32_0 : i32, i32
  }
  func.func @transform_6(%arg0: i32) -> (i32, i32) {
    %c0_i32 = arith.constant 0 : i32
    %c0_i32_0 = arith.constant 0 : i32
    %c0_i32_1 = arith.constant 0 : i32
    return %c0_i32, %c0_i32_0 : i32, i32
  }
  func.func @transform_7(%arg0: i32) -> (i32, i32) {
    %c0_i32 = arith.constant 0 : i32
    %c0_i32_0 = arith.constant 0 : i32
    return %arg0, %c0_i32 : i32, i32
  }
}

</mosaic_0001>

<llo_original>
// kernel: disc_msdanet_forward.1
$region0: #{disc_msdanet_forward.1}
  #allocation0 [shape = 'u32[]', space=smem, size = 0x4, offset = 0x4, fixed_abs, tag = 'smem constant byte address 0x4 - core index']
  #allocation1 [shape = 'u32[144,128]{1,0:T(1,128)}', space=vmem, size = 0x12000, scoped, tag = 'internal scratch']
  %s0 = inlined_call_operand.vmem [shape: bf16[256,19], index: 0, kind: input, shape index: {}]
  %s1 = inlined_call_operand.vmem [shape: bf16[19,128], index: 1, kind: input, shape index: {}]
  %s2 = inlined_call_operand.vmem [shape: f32[1,128], index: 2, kind: input, shape index: {}]
  %s3 = inlined_call_operand.vmem [shape: bf16[128,128], index: 3, kind: input, shape index: {}]
  %s4 = inlined_call_operand.vmem [shape: f32[1,128], index: 4, kind: input, shape index: {}]
  %s5 = inlined_call_operand.vmem [shape: bf16[128,128], index: 5, kind: input, shape index: {}]
  %s6 = inlined_call_operand.vmem [shape: f32[1,128], index: 6, kind: input, shape index: {}]
  %s7 = inlined_call_operand.vmem [shape: f32[256,128], index: 7, kind: output, shape index: {}]
  %s8 = sld [smem:[#allocation0]]
  $region61: #{disc_msdanet_forward.1} parent=0
    _
  %s10 = ssub.s32 1, %s8
  %s11 = scalar_select 0, %s10, %s8
  loop: start=0, step=1, limit=6
  $region2: #{disc_msdanet_forward.1} parent=0 // loop_pre_header
    _
  $region3: #{disc_msdanet_forward.1} parent=0 // loop_header
    %s13 = sphi 0, %s17
    %p14 = scmp.ge.s32.totalorder %s13, 6
    %s23 = sphi 0, %s25
    %s26 = sphi 0, %s23
    %s27 = sphi 0, %s26
    %s43 = sphi 0, %s27
    %s47 = sphi 0, %s47
    %s49 = sphi 0, %s47
    %s50 = sphi 0, %s49
    %s64 = sphi 0, %s50
    %s68 = sphi 0, %s68
    %s70 = sphi 0, %s68
    %s71 = sphi 0, %s70
    %s85 = sphi 0, %s71
    %s89 = sphi 0, %s89
    %s91 = sphi 0, %s89
    %s92 = sphi 0, %s91
    %s106 = sphi 0, %s92
    %s110 = sphi 0, %s110
    %s112 = sphi 0, %s110
    %s113 = sphi 0, %s112
    %s127 = sphi 0, %s113
    %s131 = sphi 0, %s131
    %s133 = sphi 0, %s131
    %s134 = sphi 0, %s133
    %s148 = sphi 0, %s134
    %s152 = sphi 0, %s152
    %s154 = sphi 0, %s152
    %s155 = sphi 0, %s154
    %s169 = sphi 0, %s155
    %s175 = sphi 0, %s177
    %s178 = sphi 0, %s175
    %s179 = sphi 0, %s178
    %s195 = sphi 0, %s179
  $region4: #{disc_msdanet_forward.1} parent=0 // loop_header_branch
    %16 = sbr.rel (%p14) target = $region8
  $region5: #{disc_msdanet_forward.1} parent=0 // loop_body
    %s18 = ssub.s32 %s13, 1
    %s19 = ssub.s32 %s13, 2
    %s20 = sadd.s32 %s13, 1
    %s21 = ssub.s32 %s13, %s20
    %p22 = scmp.eq.s32.totalorder %s21, 0
    %s24 = sadd.s32 %s23, 1
    %s25 = scalar_select %p22, %s23, %s24
    %p28 = pneg %p22
    %p29 = scmp.eq.s32.totalorder %s13, 3
    %p30 = por %p28, %p29
    %p31 = scmp.ne.s32.totalorder %s23, %s26
    %p32 = scmp.eq.s32.totalorder %s13, 0
    %p33 = por %p31, %p32
    %p34 = scmp.ne.s32.totalorder %s23, %s26
    %p35 = scmp.eq.s32.totalorder %s18, 3
    %p36 = por %p34, %p35
    %p37 = scmp.ne.s32.totalorder %s26, %s27
    %p38 = scmp.eq.s32.totalorder %s18, 0
    %p39 = por %p37, %p38
    %p40 = scmp.ne.s32.totalorder %s26, %s27
    %p41 = scmp.eq.s32.totalorder %s19, 3
    %p42 = por %p40, %p41
    %p44 = scmp.ne.s32.totalorder %s27, %s43
    %p45 = scmp.eq.s32.totalorder %s19, 0
    %p46 = por %p44, %p45
    %s48 = sadd.s32 %s47, 1
    %p51 = scmp.eq.s32.totalorder %s13, 3
    %p52 = scmp.ne.s32.totalorder %s47, %s49
    %p53 = scmp.eq.s32.totalorder %s13, 0
    %p54 = por %p52, %p53
    %p55 = scmp.ne.s32.totalorder %s47, %s49
    %p56 = scmp.eq.s32.totalorder %s18, 3
    %p57 = por %p55, %p56
    %p58 = scmp.ne.s32.totalorder %s49, %s50
    %p59 = scmp.eq.s32.totalorder %s18, 0
    %p60 = por %p58, %p59
    %p61 = scmp.ne.s32.totalorder %s49, %s50
    %p62 = scmp.eq.s32.totalorder %s19, 3
    %p63 = por %p61, %p62
    %p65 = scmp.ne.s32.totalorder %s50, %s64
    %p66 = scmp.eq.s32.totalorder %s19, 0
    %p67 = por %p65, %p66
    %s69 = sadd.s32 %s68, 1
    %p72 = scmp.eq.s32.totalorder %s13, 3
    %p73 = scmp.ne.s32.totalorder %s68, %s70
    %p74 = scmp.eq.s32.totalorder %s13, 0
    %p75 = por %p73, %p74
    %p76 = scmp.ne.s32.totalorder %s68, %s70
    %p77 = scmp.eq.s32.totalorder %s18, 3
    %p78 = por %p76, %p77
    %p79 = scmp.ne.s32.totalorder %s70, %s71
    %p80 = scmp.eq.s32.totalorder %s18, 0
    %p81 = por %p79, %p80
    %p82 = scmp.ne.s32.totalorder %s70, %s71
    %p83 = scmp.eq.s32.totalorder %s19, 3
    %p84 = por %p82, %p83
    %p86 = scmp.ne.s32.totalorder %s71, %s85
    %p87 = scmp.eq.s32.totalorder %s19, 0
    %p88 = por %p86, %p87
    %s90 = sadd.s32 %s89, 1
    %p93 = scmp.eq.s32.totalorder %s13, 3
    %p94 = scmp.ne.s32.totalorder %s89, %s91
    %p95 = scmp.eq.s32.totalorder %s13, 0
    %p96 = por %p94, %p95
    %p97 = scmp.ne.s32.totalorder %s89, %s91
    %p98 = scmp.eq.s32.totalorder %s18, 3
    %p99 = por %p97, %p98
    %p100 = scmp.ne.s32.totalorder %s91, %s92
    %p101 = scmp.eq.s32.totalorder %s18, 0
    %p102 = por %p100, %p101
    %p103 = scmp.ne.s32.totalorder %s91, %s92
    %p104 = scmp.eq.s32.totalorder %s19, 3
    %p105 = por %p103, %p104
    %p107 = scmp.ne.s32.totalorder %s92, %s106
    %p108 = scmp.eq.s32.totalorder %s19, 0
    %p109 = por %p107, %p108
    %s111 = sadd.s32 %s110, 1
    %p114 = scmp.eq.s32.totalorder %s13, 3
    %p115 = scmp.ne.s32.totalorder %s110, %s112
    %p116 = scmp.eq.s32.totalorder %s13, 0
    %p117 = por %p115, %p116
    %p118 = scmp.ne.s32.totalorder %s110, %s112
    %p119 = scmp.eq.s32.totalorder %s18, 3
    %p120 = por %p118, %p119
    %p121 = scmp.ne.s32.totalorder %s112, %s113
    %p122 = scmp.eq.s32.totalorder %s18, 0
    %p123 = por %p121, %p122
    %p124 = scmp.ne.s32.totalorder %s112, %s113
    %p125 = scmp.eq.s32.totalorder %s19, 3
    %p126 = por %p124, %p125
    %p128 = scmp.ne.s32.totalorder %s113, %s127
    %p129 = scmp.eq.s32.totalorder %s19, 0
    %p130 = por %p128, %p129
    %s132 = sadd.s32 %s131, 1
    %p135 = scmp.eq.s32.totalorder %s13, 3
    %p136 = scmp.ne.s32.totalorder %s131, %s133
    %p137 = scmp.eq.s32.totalorder %s13, 0
    %p138 = por %p136, %p137
    %p139 = scmp.ne.s32.totalorder %s131, %s133
    %p140 = scmp.eq.s32.totalorder %s18, 3
    %p141 = por %p139, %p140
    %p142 = scmp.ne.s32.totalorder %s133, %s134
    %p143 = scmp.eq.s32.totalorder %s18, 0
    %p144 = por %p142, %p143
    %p145 = scmp.ne.s32.totalorder %s133, %s134
    %p146 = scmp.eq.s32.totalorder %s19, 3
    %p147 = por %p145, %p146
    %p149 = scmp.ne.s32.totalorder %s134, %s148
    %p150 = scmp.eq.s32.totalorder %s19, 0
    %p151 = por %p149, %p150
    %s153 = sadd.s32 %s152, 1
    %p156 = scmp.eq.s32.totalorder %s13, 3
    %p157 = scmp.ne.s32.totalorder %s152, %s154
    %p158 = scmp.eq.s32.totalorder %s13, 0
    %p159 = por %p157, %p158
    %p160 = scmp.ne.s32.totalorder %s152, %s154
    %p161 = scmp.eq.s32.totalorder %s18, 3
    %p162 = por %p160, %p161
    %p163 = scmp.ne.s32.totalorder %s154, %s155
    %p164 = scmp.eq.s32.totalorder %s18, 0
    %p165 = por %p163, %p164
    %p166 = scmp.ne.s32.totalorder %s154, %s155
    %p167 = scmp.eq.s32.totalorder %s19, 3
    %p168 = por %p166, %p167
    %p170 = scmp.ne.s32.totalorder %s155, %s169
    %p171 = scmp.eq.s32.totalorder %s19, 0
    %p172 = por %p170, %p171
    %s173 = ssub.s32 %s13, %s20
    %p174 = scmp.eq.s32.totalorder %s173, 0
    %s176 = sadd.s32 %s175, 1
    %s177 = scalar_select %p174, %s175, %s176
    %p180 = pneg %p174
    %p181 = scmp.eq.s32.totalorder %s13, 3
    %p182 = por %p180, %p181
    %p183 = scmp.ne.s32.totalorder %s175, %s178
    %p184 = scmp.eq.s32.totalorder %s13, 0
    %p185 = por %p183, %p184
    %p186 = scmp.ne.s32.totalorder %s175, %s178
    %p187 = scmp.eq.s32.totalorder %s18, 3
    %p188 = por %p186, %p187
    %p189 = scmp.ne.s32.totalorder %s178, %s179
    %p190 = scmp.eq.s32.totalorder %s18, 0
    %p191 = por %p189, %p190
    %p192 = scmp.ne.s32.totalorder %s178, %s179
    %p193 = scmp.eq.s32.totalorder %s19, 3
    %p194 = por %p192, %p193
    %p196 = scmp.ne.s32.totalorder %s179, %s195
    %p197 = scmp.eq.s32.totalorder %s19, 0
    %p198 = por %p196, %p197
    %p199 = scmp.le.s32.totalorder 1, %s13
    %p200 = scmp.lt.s32.totalorder %s13, 5
    %p201 = pnand %p199, %p200
    %p202 = pneg %p201
    // Predicated region
    $region9: #{disc_msdanet_forward.1} parent=5 // pred_check
      _
    $region10: #{disc_msdanet_forward.1} parent=5 // pred_check_branch
      %204 = sbr.rel (%p201) target = $region12
    $region11: #{disc_msdanet_forward.1} parent=5 // pred_region
      %s205 = ssub.s32 %s13, 1
      // Predicated region
      $region13: #{disc_msdanet_forward.1} parent=11 // pred_check
        %p206 = pneg %p60
      $region14: #{disc_msdanet_forward.1} parent=11 // pred_check_branch
        %208 = sbr.rel (%p206) target = $region16
      $region15: #{disc_msdanet_forward.1} parent=11 // pred_region
        _
      $region16: #{disc_msdanet_forward.1} parent=11 // pred_fallthru
        _
      // Predicated region
      $region17: #{disc_msdanet_forward.1} parent=11 // pred_check
        %p209 = pneg %p81
      $region18: #{disc_msdanet_forward.1} parent=11 // pred_check_branch
        %211 = sbr.rel (%p209) target = $region20
      $region19: #{disc_msdanet_forward.1} parent=11 // pred_region
        _
      $region20: #{disc_msdanet_forward.1} parent=11 // pred_fallthru
        _
      // Predicated region
      $region21: #{disc_msdanet_forward.1} parent=11 // pred_check
        %p212 = pneg %p102
      $region22: #{disc_msdanet_forward.1} parent=11 // pred_check_branch
        %214 = sbr.rel (%p212) target = $region24
      $region23: #{disc_msdanet_forward.1} parent=11 // pred_region
        _
      $region24: #{disc_msdanet_forward.1} parent=11 // pred_fallthru
        _
      // Predicated region
      $region25: #{disc_msdanet_forward.1} parent=11 // pred_check
        %p215 = pneg %p123
      $region26: #{disc_msdanet_forward.1} parent=11 // pred_check_branch
        %217 = sbr.rel (%p215) target = $region28
      $region27: #{disc_msdanet_forward.1} parent=11 // pred_region
        _
      $region28: #{disc_msdanet_forward.1} parent=11 // pred_fallthru
        _
      // Predicated region
      $region29: #{disc_msdanet_forward.1} parent=11 // pred_check
        %p218 = pneg %p144
      $region30: #{disc_msdanet_forward.1} parent=11 // pred_check_branch
        %220 = sbr.rel (%p218) target = $region32
      $region31: #{disc_msdanet_forward.1} parent=11 // pred_region
        _
      $region32: #{disc_msdanet_forward.1} parent=11 // pred_fallthru
        _
      // Predicated region
      $region33: #{disc_msdanet_forward.1} parent=11 // pred_check
        %p221 = pneg %p165
      $region34: #{disc_msdanet_forward.1} parent=11 // pred_check_branch
        %223 = sbr.rel (%p221) target = $region36
      $region35: #{disc_msdanet_forward.1} parent=11 // pred_region
        _
      $region36: #{disc_msdanet_forward.1} parent=11 // pred_fallthru
        _
    $region12: #{disc_msdanet_forward.1} parent=5 // pred_fallthru
      _
    %p224 = scmp.lt.s32.totalorder %s13, 4
    // Predicated region
    $region37: #{disc_msdanet_forward.1} parent=5 // pred_check
      %p225 = pneg %p224
    $region38: #{disc_msdanet_forward.1} parent=5 // pred_check_branch
      %227 = sbr.rel (%p225) target = $region40
    $region39: #{disc_msdanet_forward.1} parent=5 // pred_region
      // Predicated region
      $region41: #{disc_msdanet_forward.1} parent=39 // pred_check
        %p228 = pneg %p33
      $region42: #{disc_msdanet_forward.1} parent=39 // pred_check_branch
        %230 = sbr.rel (%p228) target = $region44
      $region43: #{disc_msdanet_forward.1} parent=39 // pred_region
        %s231 = smul.u32 8, %s13
        %p232 = scmp.lt.s32.totalorder %s231, 31
        %s233 = scalar_select %p232, %s231, 31
        %s234 = smul.addr %s233, 4
        %s235 = scalar_lea.vmem %s0, %s234
        %s236 = smul.u32 8, %s13
      $region44: #{disc_msdanet_forward.1} parent=39 // pred_fallthru
        _
    $region40: #{disc_msdanet_forward.1} parent=5 // pred_fallthru
      _
    %p237 = scmp.le.s32.totalorder 1, %s13
    %p238 = scmp.lt.s32.totalorder %s13, 5
    %p239 = pnand %p237, %p238
    %p240 = pneg %p239
    // Predicated region
    $region45: #{disc_msdanet_forward.1} parent=5 // pred_check
      _
    $region46: #{disc_msdanet_forward.1} parent=5 // pred_check_branch
      %242 = sbr.rel (%p239) target = $region48
    $region47: #{disc_msdanet_forward.1} parent=5 // pred_region
      %s243 = ssub.s32 %s13, 1
      %s244 = smul.u32 8, %s18
      %p245 = scmp.lt.s32.totalorder %s244, 31
      %s246 = scalar_select %p245, %s244, 31
      %s247 = smul.addr %s246, 4
      %s248 = scalar_lea.vmem %s0, %s247
      %p249 = pneg %p39
      %p250 = pneg %p36
      %p251 = pneg %p60
      %p252 = pneg %p57
      %p253 = pneg %p81
      %p254 = pneg %p78
      %p255 = pneg %p102
      %p256 = pneg %p99
      %p257 = pneg %p123
      %p258 = pneg %p120
      %p259 = pneg %p144
      %p260 = pneg %p141
      %p261 = pneg %p165
      %p262 = pneg %p162
      %p263 = pneg %p191
      %p264 = pneg %p188
      %s265 = smul.u32 8, %s18
      %p266 = scmp.lt.s32.totalorder %s265, 31
      %s267 = scalar_select %p266, %s265, 31
      %s268 = smul.addr %s267, 8
      %s269 = scalar_lea.vmem %s7, %s268
      %s270 = smul.u32 8, %s18
      %p271 = scmp.lt.s32.totalorder %s270, 31
      %s272 = scalar_select %p271, %s270, 31
      %s273 = smul.addr %s272, 4
      %s274 = scalar_lea.vmem %s0, %s273
      %s275 = smul.u32 8, %s18
      %s276 = smul.u32 8, %s18
      %p277 = scmp.lt.s32.totalorder %s276, 31
      %s278 = scalar_select %p277, %s276, 31
      %s279 = smul.addr %s278, 8
      %s280 = scalar_lea.vmem %s7, %s279
      %s281 = smul.u32 8, %s18
      %v283 = vld [vmem:[%s274] sm:$0xf]
      %v284 = vld [vmem:[%s274 + $0x4] sm:$0xf]
      %v285 = vld [vmem:[%s274 + $0x8] sm:$0xf]
      %v286 = vld [vmem:[%s274 + $0xc] sm:$0xf]
      %v287 = vld [vmem:[%s274 + $0x10] sm:$0xf]
      %v288 = vld [vmem:[%s274 + $0x14] sm:$0xf]
      %v289 = vld [vmem:[%s274 + $0x18] sm:$0xf]
      %v290 = vld [vmem:[%s274 + $0x1c] sm:$0xf]
      %v291 = vld [vmem:[%s1] sm:$0xf]
      %v292 = vld [vmem:[%s1 + $0x4] sm:$0xf]
      %v293 = vld [vmem:[%s1 + $0x8] sm:$0x3]
      %v294 = vld [vmem:[%s2] sm:$0x1]
      %v296 = vlaneseq
      %v297 = vshrl.u32 %v296, 7
      %v298 = vsub.s32 0, %v297
      %v299 = vrot.slane %v294, %v298
      %v309 = vunpack.c.l.b16 %v283
      %v310 = vunpack.c.l.b16 %v284
      %v311 = vunpack.c.l.b16 %v285
      %v312 = vunpack.c.l.b16 %v286
      %v313 = vunpack.c.l.b16 %v287
      %v314 = vunpack.c.l.b16 %v288
      %v315 = vunpack.c.l.b16 %v289
      %v316 = vunpack.c.l.b16 %v290
      %v317 = vpack.c.b16 %v310, %v309
      %v318 = vpack.c.b16 %v312, %v311
      %v319 = vpack.c.b16 %v314, %v313
      %v320 = vpack.c.b16 %v316, %v315
      %v324 = vunpack.c.l.b16 %v291
      %v325 = vunpack.c.l.b16 %v292
      %v326 = vunpack.c.l.b16 %v293
      %v327 = vpack.c.b16 %v325, %v324
      %v328 = vpack.c.b16 %v326, %v326
      %vm330 = vcmask 154624
      %v332 = vsel %vm330, %v317, 0
      %v335 = vsel %vm330, %v318, 0
      %v338 = vsel %vm330, %v319, 0
      %v341 = vsel %vm330, %v320, 0
      %vm343 = vcmask 1040384
      %vm344 = vcmask 1041408
      %v345 = vsel %vm343, 4294967295, 65535
      %v346 = vsel %vm344, %v345, 0
      %v348 = vand.u32 %v328, %v346
      %350 = vmatprep.subr.bf16.mxu0 0
      %351 = vmatpush1.bf16.msra.mxu0 %v327
      %352 = vmatprep.subr.bf16.mxu0 0
      %353 = vmatpush1.bf16.msra.mxu0 %v348
      %354 = vmatprep.subr.bf16.mxu0 0
      %355 = vmatpush1.bf16.msra.mxu0 0
      %356 = vmatprep.subr.bf16.mxu0 0
      %357 = vmatpush1.bf16.msra.mxu0 0
      %358 = vmatprep.subr.bf16.mxu0 0
      %359 = vmatpush1.bf16.msra.mxu0 0
      %360 = vmatprep.subr.bf16.mxu0 0
      %361 = vmatpush1.bf16.msra.mxu0 0
      %362 = vmatprep.subr.bf16.mxu0 0
      %363 = vmatpush1.bf16.msra.mxu0 0
      %364 = vmatprep.subr.bf16.mxu0 0
      %365 = vmatpush1.bf16.msra.mxu0 0
      %366 = vmatprep.subr.bf16.mxu0 0
      %367 = vmatpush1.bf16.msra.mxu0 0
      %368 = vmatprep.subr.bf16.mxu0 0
      %369 = vmatpush1.bf16.msra.mxu0 0
      %370 = vmatprep.subr.bf16.mxu0 0
      %371 = vmatpush1.bf16.msra.mxu0 0
      %372 = vmatprep.subr.bf16.mxu0 0
      %373 = vmatpush1.bf16.msra.mxu0 0
      %374 = vmatprep.subr.bf16.mxu0 0
      %375 = vmatpush1.bf16.msra.mxu0 0
      %376 = vmatprep.subr.bf16.mxu0 0
      %377 = vmatpush1.bf16.msra.mxu0 0
      %378 = vmatprep.subr.bf16.mxu0 0
      %379 = vmatpush1.bf16.msra.mxu0 0
      %380 = vmatprep.subr.bf16.mxu0 0
      %381 = vmatpush1.bf16.msra.mxu0 0
      %382 = vmatprep.mubr.bf16.mxu0 0
      %383 = vmatmul.mubr.bf16.gmra.mrb[0].mxu0 %v332
      %v384 = vpop.f32.mrb[0].mxu0
      %v385 = vadd.f32 %v299, %v384
      %v386 = vpop.f32.mrb[0].mxu0
      %v387 = vpop.f32.mrb[0].mxu0
      %v388 = vadd.f32 %v299, %v387
      %v389 = vpop.f32.mrb[0].mxu0
      %390 = vmatprep.mubr.bf16.mxu0 0
      %391 = vmatmul.mubr.bf16.gmra.mrb[0].mxu0 %v335
      %v392 = vpop.f32.mrb[0].mxu0
      %v393 = vadd.f32 %v299, %v392
      %v394 = vpop.f32.mrb[0].mxu0
      %v395 = vpop.f32.mrb[0].mxu0
      %v396 = vadd.f32 %v299, %v395
      %v397 = vpop.f32.mrb[0].mxu0
      %398 = vmatprep.mubr.bf16.mxu0 0
      %399 = vmatmul.mubr.bf16.gmra.mrb[0].mxu0 %v338
      %v400 = vpop.f32.mrb[0].mxu0
      %v401 = vadd.f32 %v299, %v400
      %v402 = vpop.f32.mrb[0].mxu0
      %v403 = vpop.f32.mrb[0].mxu0
      %v404 = vadd.f32 %v299, %v403
      %v405 = vpop.f32.mrb[0].mxu0
      %406 = vmatprep.mubr.bf16.mxu0 0
      %407 = vmatmul.mubr.bf16.gmra.mrb[0].mxu0 %v341
      %v408 = vpop.f32.mrb[0].mxu0
      %v409 = vadd.f32 %v299, %v408
      %v410 = vpop.f32.mrb[0].mxu0
      %v411 = vpop.f32.mrb[0].mxu0
      %v412 = vadd.f32 %v299, %v411
      %v413 = vpop.f32.mrb[0].mxu0
      %414 = vdwg.mxu0
      %v415 = vmax.f32 %v385, 0.0
      %v416 = vmax.f32 %v388, 0.0
      %v417 = vmax.f32 %v393, 0.0
      %v418 = vmax.f32 %v396, 0.0
      %v419 = vmax.f32 %v401, 0.0
      %v420 = vmax.f32 %v404, 0.0
      %v421 = vmax.f32 %v409, 0.0
      %v422 = vmax.f32 %v412, 0.0
      %v423 = vpack.c.bf16 %v416, %v415
      %v424 = vpack.c.bf16 %v418, %v417
      %v425 = vpack.c.bf16 %v420, %v419
      %v426 = vpack.c.bf16 %v422, %v421
      %v427 = vld [vmem:[%s3] sm:$0xf]
      %v428 = vld [vmem:[%s3 + $0x4] sm:$0xf]
      %v429 = vld [vmem:[%s3 + $0x8] sm:$0xf]
      %v430 = vld [vmem:[%s3 + $0xc] sm:$0xf]
      %v431 = vld [vmem:[%s3 + $0x10] sm:$0xf]
      %v432 = vld [vmem:[%s3 + $0x14] sm:$0xf]
      %v433 = vld [vmem:[%s3 + $0x18] sm:$0xf]
      %v434 = vld [vmem:[%s3 + $0x1c] sm:$0xf]
      %v435 = vld [vmem:[%s3 + $0x20] sm:$0xf]
      %v436 = vld [vmem:[%s3 + $0x24] sm:$0xf]
      %v437 = vld [vmem:[%s3 + $0x28] sm:$0xf]
      %v438 = vld [vmem:[%s3 + $0x2c] sm:$0xf]
      %v439 = vld [vmem:[%s3 + $0x30] sm:$0xf]
      %v440 = vld [vmem:[%s3 + $0x34] sm:$0xf]
      %v441 = vld [vmem:[%s3 + $0x38] sm:$0xf]
      %v442 = vld [vmem:[%s3 + $0x3c] sm:$0xf]
      %v443 = vld [vmem:[%s4] sm:$0x1]
      %v445 = vlaneseq
      %v446 = vshrl.u32 %v445, 7
      %v447 = vsub.s32 0, %v446
      %v448 = vrot.slane %v443, %v447
      %v466 = vunpack.c.l.b16 %v427
      %v467 = vunpack.c.l.b16 %v428
      %v468 = vunpack.c.l.b16 %v429
      %v469 = vunpack.c.l.b16 %v430
      %v470 = vunpack.c.l.b16 %v431
      %v471 = vunpack.c.l.b16 %v432
      %v472 = vunpack.c.l.b16 %v433
      %v473 = vunpack.c.l.b16 %v434
      %v474 = vunpack.c.l.b16 %v435
      %v475 = vunpack.c.l.b16 %v436
      %v476 = vunpack.c.l.b16 %v437
      %v477 = vunpack.c.l.b16 %v438
      %v478 = vunpack.c.l.b16 %v439
      %v479 = vunpack.c.l.b16 %v440
      %v480 = vunpack.c.l.b16 %v441
      %v481 = vunpack.c.l.b16 %v442
      %v482 = vpack.c.b16 %v467, %v466
      %v483 = vpack.c.b16 %v469, %v468
      %v484 = vpack.c.b16 %v471, %v470
      %v485 = vpack.c.b16 %v473, %v472
      %v486 = vpack.c.b16 %v475, %v474
      %v487 = vpack.c.b16 %v477, %v476
      %v488 = vpack.c.b16 %v479, %v478
      %v489 = vpack.c.b16 %v481, %v480
      %498 = vmatprep.subr.bf16.mxu0 0
      %499 = vmatpush1.bf16.msra.mxu0 %v482
      %500 = vmatprep.subr.bf16.mxu0 0
      %501 = vmatpush1.bf16.msra.mxu0 %v483
      %502 = vmatprep.subr.bf16.mxu0 0
      %503 = vmatpush1.bf16.msra.mxu0 %v484
      %504 = vmatprep.subr.bf16.mxu0 0
      %505 = vmatpush1.bf16.msra.mxu0 %v485
      %506 = vmatprep.subr.bf16.mxu0 0
      %507 = vmatpush1.bf16.msra.mxu0 %v486
      %508 = vmatprep.subr.bf16.mxu0 0
      %509 = vmatpush1.bf16.msra.mxu0 %v487
      %510 = vmatprep.subr.bf16.mxu0 0
      %511 = vmatpush1.bf16.msra.mxu0 %v488
      %512 = vmatprep.subr.bf16.mxu0 0
      %513 = vmatpush1.bf16.msra.mxu0 %v489
      %514 = vmatprep.subr.bf16.mxu0 0
      %515 = vmatpush1.bf16.msra.mxu0 0
      %516 = vmatprep.subr.bf16.mxu0 0
      %517 = vmatpush1.bf16.msra.mxu0 0
      %518 = vmatprep.subr.bf16.mxu0 0
      %519 = vmatpush1.bf16.msra.mxu0 0
      %520 = vmatprep.subr.bf16.mxu0 0
      %521 = vmatpush1.bf16.msra.mxu0 0
      %522 = vmatprep.subr.bf16.mxu0 0
      %523 = vmatpush1.bf16.msra.mxu0 0
      %524 = vmatprep.subr.bf16.mxu0 0
      %525 = vmatpush1.bf16.msra.mxu0 0
      %526 = vmatprep.subr.bf16.mxu0 0
      %527 = vmatpush1.bf16.msra.mxu0 0
      %528 = vmatprep.subr.bf16.mxu0 0
      %529 = vmatpush1.bf16.msra.mxu0 0
      %530 = vmatprep.mubr.bf16.mxu0 0
      %531 = vmatmul.mubr.bf16.gmra.mrb[0].mxu0 %v423
      %v532 = vpop.f32.mrb[0].mxu0
      %v533 = vadd.f32 %v448, %v532
      %v534 = vpop.f32.mrb[0].mxu0
      %v535 = vpop.f32.mrb[0].mxu0
      %v536 = vadd.f32 %v448, %v535
      %v537 = vpop.f32.mrb[0].mxu0
      %538 = vmatprep.mubr.bf16.mxu0 0
      %539 = vmatmul.mubr.bf16.gmra.mrb[0].mxu0 %v424
      %v540 = vpop.f32.mrb[0].mxu0
      %v541 = vadd.f32 %v448, %v540
      %v542 = vpop.f32.mrb[0].mxu0
      %v543 = vpop.f32.mrb[0].mxu0
      %v544 = vadd.f32 %v448, %v543
      %v545 = vpop.f32.mrb[0].mxu0
      %546 = vmatprep.mubr.bf16.mxu0 0
      %547 = vmatmul.mubr.bf16.gmra.mrb[0].mxu0 %v425
      %v548 = vpop.f32.mrb[0].mxu0
      %v549 = vadd.f32 %v448, %v548
      %v550 = vpop.f32.mrb[0].mxu0
      %v551 = vpop.f32.mrb[0].mxu0
      %v552 = vadd.f32 %v448, %v551
      %v553 = vpop.f32.mrb[0].mxu0
      %554 = vmatprep.mubr.bf16.mxu0 0
      %555 = vmatmul.mubr.bf16.gmra.mrb[0].mxu0 %v426
      %v556 = vpop.f32.mrb[0].mxu0
      %v557 = vadd.f32 %v448, %v556
      %v558 = vpop.f32.mrb[0].mxu0
      %v559 = vpop.f32.mrb[0].mxu0
      %v560 = vadd.f32 %v448, %v559
      %v561 = vpop.f32.mrb[0].mxu0
      %562 = vdwg.mxu0
      %v563 = vmax.f32 %v533, 0.0
      %v564 = vmax.f32 %v536, 0.0
      %v565 = vmax.f32 %v541, 0.0
      %v566 = vmax.f32 %v544, 0.0
      %v567 = vmax.f32 %v549, 0.0
      %v568 = vmax.f32 %v552, 0.0
      %v569 = vmax.f32 %v557, 0.0
      %v570 = vmax.f32 %v560, 0.0
      %v571 = vpack.c.bf16 %v564, %v563
      %v572 = vpack.c.bf16 %v566, %v565
      %v573 = vpack.c.bf16 %v568, %v567
      %v574 = vpack.c.bf16 %v570, %v569
      %v575 = vld [vmem:[%s5] sm:$0xf]
      %v576 = vld [vmem:[%s5 + $0x4] sm:$0xf]
      %v577 = vld [vmem:[%s5 + $0x8] sm:$0xf]
      %v578 = vld [vmem:[%s5 + $0xc] sm:$0xf]
      %v579 = vld [vmem:[%s5 + $0x10] sm:$0xf]
      %v580 = vld [vmem:[%s5 + $0x14] sm:$0xf]
      %v581 = vld [vmem:[%s5 + $0x18] sm:$0xf]
      %v582 = vld [vmem:[%s5 + $0x1c] sm:$0xf]
      %v583 = vld [vmem:[%s5 + $0x20] sm:$0xf]
      %v584 = vld [vmem:[%s5 + $0x24] sm:$0xf]
      %v585 = vld [vmem:[%s5 + $0x28] sm:$0xf]
      %v586 = vld [vmem:[%s5 + $0x2c] sm:$0xf]
      %v587 = vld [vmem:[%s5 + $0x30] sm:$0xf]
      %v588 = vld [vmem:[%s5 + $0x34] sm:$0xf]
      %v589 = vld [vmem:[%s5 + $0x38] sm:$0xf]
      %v590 = vld [vmem:[%s5 + $0x3c] sm:$0xf]
      %v591 = vld [vmem:[%s6] sm:$0x1]
      %v593 = vlaneseq
      %v594 = vshrl.u32 %v593, 7
      %v595 = vsub.s32 0, %v594
      %v596 = vrot.slane %v591, %v595
      %v614 = vunpack.c.l.b16 %v575
      %v615 = vunpack.c.l.b16 %v576
      %v616 = vunpack.c.l.b16 %v577
      %v617 = vunpack.c.l.b16 %v578
      %v618 = vunpack.c.l.b16 %v579
      %v619 = vunpack.c.l.b16 %v580
      %v620 = vunpack.c.l.b16 %v581
      %v621 = vunpack.c.l.b16 %v582
      %v622 = vunpack.c.l.b16 %v583
      %v623 = vunpack.c.l.b16 %v584
      %v624 = vunpack.c.l.b16 %v585
      %v625 = vunpack.c.l.b16 %v586
      %v626 = vunpack.c.l.b16 %v587
      %v627 = vunpack.c.l.b16 %v588
      %v628 = vunpack.c.l.b16 %v589
      %v629 = vunpack.c.l.b16 %v590
      %v630 = vpack.c.b16 %v615, %v614
      %v631 = vpack.c.b16 %v617, %v616
      %v632 = vpack.c.b16 %v619, %v618
      %v633 = vpack.c.b16 %v621, %v620
      %v634 = vpack.c.b16 %v623, %v622
      %v635 = vpack.c.b16 %v625, %v624
      %v636 = vpack.c.b16 %v627, %v626
      %v637 = vpack.c.b16 %v629, %v628
      %646 = vmatprep.subr.bf16.mxu0 0
      %647 = vmatpush1.bf16.msra.mxu0 %v630
      %648 = vmatprep.subr.bf16.mxu0 0
      %649 = vmatpush1.bf16.msra.mxu0 %v631
      %650 = vmatprep.subr.bf16.mxu0 0
      %651 = vmatpush1.bf16.msra.mxu0 %v632
      %652 = vmatprep.subr.bf16.mxu0 0
      %653 = vmatpush1.bf16.msra.mxu0 %v633
      %654 = vmatprep.subr.bf16.mxu0 0
      %655 = vmatpush1.bf16.msra.mxu0 %v634
      %656 = vmatprep.subr.bf16.mxu0 0
      %657 = vmatpush1.bf16.msra.mxu0 %v635
      %658 = vmatprep.subr.bf16.mxu0 0
      %659 = vmatpush1.bf16.msra.mxu0 %v636
      %660 = vmatprep.subr.bf16.mxu0 0
      %661 = vmatpush1.bf16.msra.mxu0 %v637
      %662 = vmatprep.subr.bf16.mxu0 0
      %663 = vmatpush1.bf16.msra.mxu0 0
      %664 = vmatprep.subr.bf16.mxu0 0
      %665 = vmatpush1.bf16.msra.mxu0 0
      %666 = vmatprep.subr.bf16.mxu0 0
      %667 = vmatpush1.bf16.msra.mxu0 0
      %668 = vmatprep.subr.bf16.mxu0 0
      %669 = vmatpush1.bf16.msra.mxu0 0
      %670 = vmatprep.subr.bf16.mxu0 0
      %671 = vmatpush1.bf16.msra.mxu0 0
      %672 = vmatprep.subr.bf16.mxu0 0
      %673 = vmatpush1.bf16.msra.mxu0 0
      %674 = vmatprep.subr.bf16.mxu0 0
      %675 = vmatpush1.bf16.msra.mxu0 0
      %676 = vmatprep.subr.bf16.mxu0 0
      %677 = vmatpush1.bf16.msra.mxu0 0
      %678 = vmatprep.mubr.bf16.mxu0 0
      %679 = vmatmul.mubr.bf16.gmra.mrb[0].mxu0 %v571
      %v680 = vpop.f32.mrb[0].mxu0
      %v681 = vadd.f32 %v596, %v680
      %v682 = vpop.f32.mrb[0].mxu0
      %v683 = vpop.f32.mrb[0].mxu0
      %v684 = vadd.f32 %v596, %v683
      %v685 = vpop.f32.mrb[0].mxu0
      %686 = vmatprep.mubr.bf16.mxu0 0
      %687 = vmatmul.mubr.bf16.gmra.mrb[0].mxu0 %v572
      %v688 = vpop.f32.mrb[0].mxu0
      %v689 = vadd.f32 %v596, %v688
      %v690 = vpop.f32.mrb[0].mxu0
      %v691 = vpop.f32.mrb[0].mxu0
      %v692 = vadd.f32 %v596, %v691
      %v693 = vpop.f32.mrb[0].mxu0
      %694 = vmatprep.mubr.bf16.mxu0 0
      %695 = vmatmul.mubr.bf16.gmra.mrb[0].mxu0 %v573
      %v696 = vpop.f32.mrb[0].mxu0
      %v697 = vadd.f32 %v596, %v696
      %v698 = vpop.f32.mrb[0].mxu0
      %v699 = vpop.f32.mrb[0].mxu0
      %v700 = vadd.f32 %v596, %v699
      %v701 = vpop.f32.mrb[0].mxu0
      %702 = vmatprep.mubr.bf16.mxu0 0
      %703 = vmatmul.mubr.bf16.gmra.mrb[0].mxu0 %v574
      %v704 = vpop.f32.mrb[0].mxu0
      %v705 = vadd.f32 %v596, %v704
      %v706 = vpop.f32.mrb[0].mxu0
      %v707 = vpop.f32.mrb[0].mxu0
      %v708 = vadd.f32 %v596, %v707
      %v709 = vpop.f32.mrb[0].mxu0
      %710 = vdwg.mxu0
      %v711 = vmax.f32 %v681, 0.0
      %v712 = vmax.f32 %v684, 0.0
      %v713 = vmax.f32 %v689, 0.0
      %v714 = vmax.f32 %v692, 0.0
      %v715 = vmax.f32 %v697, 0.0
      %v716 = vmax.f32 %v700, 0.0
      %v717 = vmax.f32 %v705, 0.0
      %v718 = vmax.f32 %v708, 0.0
      %719 = vst [vmem:[%s280] sm:$0xff] %v711
      %720 = vst [vmem:[%s280 + $0x8] sm:$0xff] %v712
      %721 = vst [vmem:[%s280 + $0x10] sm:$0xff] %v713
      %722 = vst [vmem:[%s280 + $0x18] sm:$0xff] %v714
      %723 = vst [vmem:[%s280 + $0x20] sm:$0xff] %v715
      %724 = vst [vmem:[%s280 + $0x28] sm:$0xff] %v716
      %725 = vst [vmem:[%s280 + $0x30] sm:$0xff] %v717
      %726 = vst [vmem:[%s280 + $0x38] sm:$0xff] %v718
      %s727 = smul.u32 8, %s18
      %p728 = scmp.lt.s32.totalorder %s727, 31
      %s729 = scalar_select %p728, %s727, 31
      %s730 = smul.addr %s729, 8
      %s731 = scalar_lea.vmem %s7, %s730
      // Predicated region
      $region49: #{disc_msdanet_forward.1} parent=47 // pred_check
        %p732 = pneg %p188
      $region50: #{disc_msdanet_forward.1} parent=47 // pred_check_branch
        %734 = sbr.rel (%p732) target = $region52
      $region51: #{disc_msdanet_forward.1} parent=47 // pred_region
        %s735 = smul.u32 8, %s18
      $region52: #{disc_msdanet_forward.1} parent=47 // pred_fallthru
        _
    $region48: #{disc_msdanet_forward.1} parent=5 // pred_fallthru
      _
    %p736 = scmp.le.s32.totalorder 2, %s13
    // Predicated region
    $region53: #{disc_msdanet_forward.1} parent=5 // pred_check
      %p737 = pneg %p736
    $region54: #{disc_msdanet_forward.1} parent=5 // pred_check_branch
      %739 = sbr.rel (%p737) target = $region56
    $region55: #{disc_msdanet_forward.1} parent=5 // pred_region
      %s740 = ssub.s32 %s13, 2
      // Predicated region
      $region57: #{disc_msdanet_forward.1} parent=55 // pred_check
        %p741 = pneg %p194
      $region58: #{disc_msdanet_forward.1} parent=55 // pred_check_branch
        %743 = sbr.rel (%p741) target = $region60
      $region59: #{disc_msdanet_forward.1} parent=55 // pred_region
        %s744 = smul.u32 8, %s19
        %p745 = scmp.lt.s32.totalorder %s744, 31
        %s746 = scalar_select %p745, %s744, 31
        %s747 = smul.addr %s746, 8
        %s748 = scalar_lea.vmem %s7, %s747
      $region60: #{disc_msdanet_forward.1} parent=55 // pred_fallthru
        _
    $region56: #{disc_msdanet_forward.1} parent=5 // pred_fallthru
      _
  $region6: #{disc_msdanet_forward.1} parent=0 // loop_footer
    %s17 = sadd.s32 1, %s13
  $region7: #{disc_msdanet_forward.1} parent=0 // loop_footer_branch
    %12 = sbr.rel target = $region3
  $region8: #{disc_msdanet_forward.1} parent=0 // loop_exit
    _

</llo_original>
